<compile_context>
chip_gen: v5e
topology: v5e:2x2
jax: 0.10.0
libtpu: 0.0.40
codegen_flags: <defaults>
</compile_context>

<pallas_src>
import math
from functools import partial

import jax
import jax.numpy as jnp
from jax.experimental import pallas as pl
from jax.experimental.pallas import tpu as pltpu


def mha_kernel(x_ref, wq_ref, wk_ref, wv_ref, bq_ref, bk_ref, bv_ref,
               wo_ref, bo_ref, gamma_ref, beta_ref, gw_ref,
               ctx_ref, gattn_ref, acc_ref,
               *, head_size, block_b, seq_len, eps=1e-5):
    d = head_size
    Bt, S = block_b, seq_len
    R = Bt * S
    H = acc_ref.shape[-1]
    h = pl.program_id(1)

    @pl.when(h == 0)
    def _():
        acc_ref[...] = jnp.zeros_like(acc_ref)

    x = x_ref[0]                                               # (R, H) bf16

    # Per-head projections; weights arrive head-blocked via the BlockSpec DMA,
    # so there is no in-kernel lane slicing.  Q is pre-scaled by 1/sqrt(d)
    # (cheap (R, d) multiply instead of an (S, S) one on the scores).
    scale = 1.0 / math.sqrt(d)
    q = (jnp.dot(x, wq_ref[0], preferred_element_type=jnp.float32)
         + bq_ref[0]) * scale                                  # (R, d) f32
    k = jnp.dot(x, wk_ref[0], preferred_element_type=jnp.float32) + bk_ref[0]
    v = jnp.dot(x, wv_ref[0], preferred_element_type=jnp.float32) + bv_ref[0]

    q3 = q.astype(jnp.bfloat16).reshape(Bt, S, d)
    k3 = k.astype(jnp.bfloat16).reshape(Bt, S, d)
    v3 = v.astype(jnp.bfloat16).reshape(Bt, S, d)

    # Batched attention for this head (single batch dim = block_b samples).
    s = jnp.einsum('bqd,bkd->bqk', q3, k3, preferred_element_type=jnp.float32)
    s = s - jnp.max(s, axis=-1, keepdims=True)
    p = jnp.exp(s)
    attn = p * pl.reciprocal(jnp.sum(p, axis=-1, keepdims=True), approx=True)
    # TODO(synk): nn.Dropout on the attention weights omitted (eval mode).
    ctx_h = jnp.einsum('bqk,bkd->bqd', attn.astype(jnp.bfloat16), v3,
                       preferred_element_type=jnp.float32)     # (Bt, S, d)

    # This head's contribution to the output projection, accumulated into a
    # full-lane-width (R, H) f32 scratch (no masked partial stores).
    acc_ref[...] += jnp.dot(ctx_h.reshape(R, d).astype(jnp.bfloat16), wo_ref[0],
                            preferred_element_type=jnp.float32)

    @pl.when(h == pl.num_programs(1) - 1)
    def _():
        out = acc_ref[...] + bo_ref[...]                       # (R, H) f32

        # LayerNorm (f32, biased variance, torch.nn.LayerNorm eps).
        mean = jnp.mean(out, axis=-1, keepdims=True)
        var = jnp.mean((out - mean) ** 2, axis=-1, keepdims=True)
        normed = ((out - mean) * jax.lax.rsqrt(var + eps)
                  * gamma_ref[...] + beta_ref[...])

        # Global-attention pooling over the sequence axis.  Exact reciprocal:
        # gattn is a user-visible output.
        sc = jnp.sum(normed * gw_ref[...], axis=-1, keepdims=True)   # (R, 1)
        sc3 = sc.reshape(Bt, S, 1)
        sc3 = sc3 - jnp.max(sc3, axis=1, keepdims=True)
        e = jnp.exp(sc3)
        ga3 = e / jnp.sum(e, axis=1, keepdims=True)                  # (Bt, S, 1)

        out3 = out.reshape(Bt, S, H)
        ctx_ref[0] = jnp.sum(out3 * ga3, axis=1)                     # (Bt, H)
        # Lane-dense whenever S >= 128; for small S this store is tiny.
        gattn_ref[0] = ga3[:, :, 0]                                  # (Bt, S)


def _tpu_generation_defaults():
    """Per-generation MXU row target and per-core VMEM capacity (bytes)."""
    kind = jax.devices()[0].device_kind.lower()
    try:
        vmem_cap = int(pltpu.get_tpu_info().vmem_capacity_bytes)
    except Exception:
        # Narrow capability probe only: fall back to known per-generation
        # capacities (v7x: 64 MiB per TensorCore, v5e/v6e: 128 MiB).
        vmem_cap = (64 if "v7" in kind else 128) * 2 ** 20
    if "v5" in kind:
        row_target = 128     # v5e MXU is 4x128x128: 128 rows already fill it
    elif "v6" in kind:
        row_target = 512     # 128 MiB VMEM: amortize per-grid-step overhead
    else:
        row_target = 256
    return row_target, vmem_cap


def _vmem_estimate(block_b, S, H, d):
    """Rough per-grid-step VMEM working set in bytes."""
    R = block_b * S
    f32, bf16 = 4, 2
    return (2 * R * H * bf16                 # x block (double-buffered)
            + 2 * 4 * H * d * bf16           # wq/wk/wv/wo head blocks (double-buffered)
            + (6 * d + 8 * H) * f32          # biases / LN params / gw
            + 3 * R * d * (f32 + bf16)       # q/k/v f32 + bf16 copies
            + 2 * block_b * S * S * f32      # scores + probs
            + R * d * f32                    # per-head context
            + R * H * f32                    # output-projection accumulator
            + 3 * R * H * f32                # out / normed / pooled temporaries
            + 2 * block_b * (H + S) * f32)   # output blocks (double-buffered)


def multi_head_attention(x, params, num_heads, *, block_b=None):
    B, S, H = x.shape
    assert H % num_heads == 0, "hidden_size must be divisible by num_heads"
    d = H // num_heads

    row_target, vmem_cap = _tpu_generation_defaults()
    if block_b is None:
        block_b = max(1, min(B, row_target // max(S, 1)))
        if B >= 2:
            # keep >= 2 steps on the parallel batch axis (v7x: 2 TCs/chip)
            block_b = min(block_b, B // 2)
        while B % block_b:
            block_b -= 1
        # shrink until the working set sits comfortably inside per-core VMEM
        while block_b > 1 and 2 * _vmem_estimate(block_b, S, H, d) > vmem_cap // 2:
            block_b -= 1
            while B % block_b:
                block_b -= 1
    else:
        while B % block_b:
            block_b -= 1

    R = block_b * S
    est = _vmem_estimate(block_b, S, H, d)
    vmem_limit = int(min((3 * vmem_cap) // 4, max(16 * 2 ** 20, 2 * est)))

    # Head-major parameter layouts: all per-head selection happens in the
    # BlockSpec index_maps (DMA of full-lane-width blocks), never as in-kernel
    # lane slices.
    def head_w(w):   # (H, H) -> (nh, H, d)
        return w.reshape(H, num_heads, d).transpose(1, 0, 2).astype(jnp.bfloat16)

    def head_b(b):   # (1, H) -> (nh, 1, d)
        return b.reshape(1, num_heads, d).transpose(1, 0, 2).astype(jnp.float32)

    wq3, wk3, wv3 = head_w(params["wq"]), head_w(params["wk"]), head_w(params["wv"])
    bq3, bk3, bv3 = head_b(params["bq"]), head_b(params["bk"]), head_b(params["bv"])
    wo3 = params["wo"].reshape(num_heads, d, H).astype(jnp.bfloat16)
    bo = params["bo"].astype(jnp.float32)
    gamma = params["gamma"].astype(jnp.float32)
    beta = params["beta"].astype(jnp.float32)
    gw = params["gw"].astype(jnp.float32)
    xb = x.astype(jnp.bfloat16).reshape(B // block_b, R, H)

    kernel = partial(mha_kernel, head_size=d, block_b=block_b, seq_len=S)

    head_w_spec = pl.BlockSpec((1, H, d), lambda b, h: (h, 0, 0))
    head_b_spec = pl.BlockSpec((1, 1, d), lambda b, h: (h, 0, 0))
    row_spec = pl.BlockSpec((1, H), lambda b, h: (0, 0))

    in_specs = [
        pl.BlockSpec((1, R, H), lambda b, h: (b, 0, 0)),       # x (bf16)
        head_w_spec, head_w_spec, head_w_spec,                  # wq / wk / wv
        head_b_spec, head_b_spec, head_b_spec,                  # bq / bk / bv
        pl.BlockSpec((1, d, H), lambda b, h: (h, 0, 0)),       # wo
        row_spec, row_spec, row_spec, row_spec,                 # bo, gamma, beta, gw
    ]
    out_specs = (pl.BlockSpec((1, block_b, H), lambda b, h: (b, 0, 0)),
                 pl.BlockSpec((1, block_b, S), lambda b, h: (b, 0, 0)))
    out_shape = (jax.ShapeDtypeStruct((B // block_b, block_b, H), jnp.float32),
                 jax.ShapeDtypeStruct((B // block_b, block_b, S), jnp.float32))

    ctx, ga = pl.pallas_call(
        kernel,
        out_shape=out_shape,
        grid_spec=pltpu.PrefetchScalarGridSpec(
            num_scalar_prefetch=0,
            grid=(B // block_b, num_heads),      # reduction (head) axis last
            in_specs=in_specs,
            out_specs=out_specs,
            scratch_shapes=[pltpu.VMEM((R, H), jnp.float32)],
        ),
        compiler_params=pltpu.CompilerParams(
            dimension_semantics=("parallel", "arbitrary"),
            vmem_limit_bytes=vmem_limit,
        ),
    )(xb, wq3, wk3, wv3, bq3, bk3, bv3, wo3, bo, gamma, beta, gw)

    return ctx.reshape(B, H), ga.reshape(B, S)


def ref_forward(x, p, num_heads, compute_dtype=jnp.float32):
    """Pure-JAX reference mirroring the PyTorch forward (eval mode).

    compute_dtype controls the matmul-operand precision; the kernel uses
    bfloat16 operands with f32 accumulation."""
    B, S, H = x.shape
    hd = H // num_heads
    cd = compute_dtype

    def mm(a, w):
        return jnp.dot(a.astype(cd), w.astype(cd),
                       preferred_element_type=jnp.float32)

    def heads(t):
        return t.reshape(B, S, num_heads, hd).transpose(0, 2, 1, 3)

    q = heads(mm(x, p["wq"]) + p["bq"])
    k = heads(mm(x, p["wk"]) + p["bk"])
    v = heads(mm(x, p["wv"]) + p["bv"])
    scores = jnp.einsum("bhqd,bhkd->bhqk", q.astype(cd), k.astype(cd),
                        preferred_element_type=jnp.float32) / math.sqrt(hd)
    attn = jax.nn.softmax(scores, axis=-1)
    ctx = jnp.einsum("bhqk,bhkd->bhqd", attn.astype(cd), v.astype(cd),
                     preferred_element_type=jnp.float32)
    ctx = ctx.transpose(0, 2, 1, 3).reshape(B, S, H)
    out = mm(ctx, p["wo"]) + p["bo"]
    mean = out.mean(-1, keepdims=True)
    var = ((out - mean) ** 2).mean(-1, keepdims=True)
    normed = (out - mean) / jnp.sqrt(var + 1e-5) * p["gamma"] + p["beta"]
    sc = jnp.sum(normed * p["gw"], axis=-1, keepdims=True)
    ga = jax.nn.softmax(sc, axis=1)
    return jnp.sum(out * ga, axis=1), ga[..., 0]


def init_params(key, hidden_size):
    ks = jax.random.split(key, 4)
    H = hidden_size
    bound = 1.0 / math.sqrt(H)
    kw = jax.random.split(ks[0], 4)
    kb = jax.random.split(ks[1], 4)

    def lin_w(k):
        return jax.random.uniform(k, (H, H), jnp.float32, -bound, bound)

    def lin_b(k):
        return jax.random.uniform(k, (1, H), jnp.float32, -bound, bound)

    xav = math.sqrt(6.0 / (H + 1))
    return {
        "wq": lin_w(kw[0]), "bq": lin_b(kb[0]),
        "wk": lin_w(kw[1]), "bk": lin_b(kb[1]),
        "wv": lin_w(kw[2]), "bv": lin_b(kb[2]),
        "wo": lin_w(kw[3]), "bo": lin_b(kb[3]),
        "gamma": jnp.ones((1, H), jnp.float32),
        "beta": jnp.zeros((1, H), jnp.float32),
        # global_attention_weights (H, 1) stored row-major as (1, H)
        "gw": jax.random.uniform(ks[2], (1, H), jnp.float32, -xav, xav),
    }


if __name__ == "__main__":
    B, S, H, NUM_HEADS = 2, 8, 32, 4
    key = jax.random.PRNGKey(0)
    k_x, k_p = jax.random.split(key)
    x = jax.random.normal(k_x, (B, S, H), jnp.float32)
    params = init_params(k_p, H)

    ref_mix_ctx, ref_mix_ga = ref_forward(x, params, NUM_HEADS, jnp.bfloat16)
    ref_f32_ctx, ref_f32_ga = ref_forward(x, params, NUM_HEADS, jnp.float32)

    # exercise both the auto-derived tiling (block_b capped to keep >= 2
    # parallel grid steps) and a whole-batch tile (grid = (1, num_heads))
    for bb in (None, 2):
        ctx, ga = multi_head_attention(x, params, NUM_HEADS, block_b=bb)
        jax.block_until_ready((ctx, ga))
        assert ctx.shape == (B, H) and ga.shape == (B, S)
        # tight check vs a reference using the same bf16-operand / f32-accum math
        assert jnp.allclose(ctx, ref_mix_ctx, atol=1e-2, rtol=1e-2)
        assert jnp.allclose(ga, ref_mix_ga, atol=1e-2, rtol=1e-2)
        # loose check vs the pure-f32 PyTorch-equivalent reference
        assert jnp.allclose(ctx, ref_f32_ctx, atol=1e-1, rtol=1e-1)
        assert jnp.allclose(ga, ref_f32_ga, atol=1e-1, rtol=1e-1)

    print("KERNEL_OK")
</pallas_src>

<mosaic_0001>
module attributes {stable_mosaic.version = 11 : i64} {
  func.func @mha_kernel(%arg0: i32, %arg1: i32, %arg2: memref<1x8x32xbf16, #tpu.memory_space<vmem>>, %arg3: memref<1x32x8xbf16, #tpu.memory_space<vmem>>, %arg4: memref<1x32x8xbf16, #tpu.memory_space<vmem>>, %arg5: memref<1x32x8xbf16, #tpu.memory_space<vmem>>, %arg6: memref<1x1x8xf32, #tpu.memory_space<vmem>>, %arg7: memref<1x1x8xf32, #tpu.memory_space<vmem>>, %arg8: memref<1x1x8xf32, #tpu.memory_space<vmem>>, %arg9: memref<1x8x32xbf16, #tpu.memory_space<vmem>>, %arg10: memref<1x32xf32, #tpu.memory_space<vmem>>, %arg11: memref<1x32xf32, #tpu.memory_space<vmem>>, %arg12: memref<1x32xf32, #tpu.memory_space<vmem>>, %arg13: memref<1x32xf32, #tpu.memory_space<vmem>>, %arg14: memref<1x1x32xf32, #tpu.memory_space<vmem>>, %arg15: memref<1x1x8xf32, #tpu.memory_space<vmem>>, %arg16: memref<8x32xf32, #tpu.memory_space<vmem>>) attributes {dimension_semantics = [#tpu.dimension_semantics<parallel>, #tpu.dimension_semantics<arbitrary>], iteration_bounds = array<i64: 2, 4>, scalar_prefetch = 0 : i64, scratch_operands = 1 : i64, tpu.core_type = #tpu.core_type<tc>, window_params = [{transform_indices = @transform_0, window_bounds = array<i64: 1, 8, 32>}, {transform_indices = @transform_1, window_bounds = array<i64: 1, 32, 8>}, {transform_indices = @transform_2, window_bounds = array<i64: 1, 32, 8>}, {transform_indices = @transform_3, window_bounds = array<i64: 1, 32, 8>}, {transform_indices = @transform_4, window_bounds = array<i64: 1, 1, 8>}, {transform_indices = @transform_5, window_bounds = array<i64: 1, 1, 8>}, {transform_indices = @transform_6, window_bounds = array<i64: 1, 1, 8>}, {transform_indices = @transform_7, window_bounds = array<i64: 1, 8, 32>}, {pipeline_mode = #tpu.pipeline_mode<synchronous>, transform_indices = @transform_8, window_bounds = array<i64: 1, 32>}, {pipeline_mode = #tpu.pipeline_mode<synchronous>, transform_indices = @transform_9, window_bounds = array<i64: 1, 32>}, {pipeline_mode = #tpu.pipeline_mode<synchronous>, transform_indices = @transform_10, window_bounds = array<i64: 1, 32>}, {pipeline_mode = #tpu.pipeline_mode<synchronous>, transform_indices = @transform_11, window_bounds = array<i64: 1, 32>}, {transform_indices = @transform_12, window_bounds = array<i64: 1, 1, 32>}, {transform_indices = @transform_13, window_bounds = array<i64: 1, 1, 8>}]} {
    %c0_i32 = arith.constant 0 : i32
    %0 = arith.cmpi eq, %arg1, %c0_i32 : i32
    %1 = arith.extui %0 : i1 to i32
    %c0_i32_0 = arith.constant 0 : i32
    %2 = arith.cmpi ne, %1, %c0_i32_0 : i32
    scf.if %2 {
      %cst_37 = arith.constant 0.000000e+00 : f32
      %58 = vector.broadcast %cst_37 : f32 to vector<8x32xf32>
      %c0_38 = arith.constant 0 : index
      %c0_39 = arith.constant 0 : index
      %59 = vector.load %arg16[%c0_38, %c0_39] : memref<8x32xf32, #tpu.memory_space<vmem>>, vector<8x32xf32>
      tpu.vector_store %arg16[%c0_38, %c0_39], %58 {strides = array<i32>} : memref<8x32xf32, #tpu.memory_space<vmem>>, vector<8x32xf32>,
    } else {
    }
    %c0 = arith.constant 0 : index
    %c0_1 = arith.constant 0 : index
    %c0_2 = arith.constant 0 : index
    %3 = vector.load %arg2[%c0, %c0_1, %c0_2] : memref<1x8x32xbf16, #tpu.memory_space<vmem>>, vector<1x8x32xbf16>
    %4 = vector.shape_cast %3 : vector<1x8x32xbf16> to vector<8x32xbf16>
    %c0_3 = arith.constant 0 : index
    %c0_4 = arith.constant 0 : index
    %c0_5 = arith.constant 0 : index
    %5 = vector.load %arg3[%c0_3, %c0_4, %c0_5] : memref<1x32x8xbf16, #tpu.memory_space<vmem>>, vector<1x32x8xbf16>
    %6 = vector.shape_cast %5 : vector<1x32x8xbf16> to vector<32x8xbf16>
    %cst = arith.constant dense<0.000000e+00> : vector<8x8xf32>
    %7 = tpu.matmul %4, %6, %cst {dimension_numbers = #tpu.dot_dimension_numbers<[1], [0], [0], [1], [0, 0, 1, 1], [], []>} : vector<8x32xbf16>, vector<32x8xbf16>, vector<8x8xf32> -> vector<8x8xf32>
    %c0_6 = arith.constant 0 : index
    %c0_7 = arith.constant 0 : index
    %c0_8 = arith.constant 0 : index
    %8 = vector.load %arg6[%c0_6, %c0_7, %c0_8] : memref<1x1x8xf32, #tpu.memory_space<vmem>>, vector<1x1x8xf32>
    %9 = vector.shape_cast %8 : vector<1x1x8xf32> to vector<1x8xf32>
    %10 = vector.broadcast %9 : vector<1x8xf32> to vector<8x8xf32>
    %11 = arith.addf %7, %10 : vector<8x8xf32>
    %cst_9 = arith.constant 0.353553385 : f32
    %12 = vector.broadcast %cst_9 : f32 to vector<8x8xf32>
    %13 = arith.mulf %11, %12 : vector<8x8xf32>
    %c0_10 = arith.constant 0 : index
    %c0_11 = arith.constant 0 : index
    %c0_12 = arith.constant 0 : index
    %14 = vector.load %arg4[%c0_10, %c0_11, %c0_12] : memref<1x32x8xbf16, #tpu.memory_space<vmem>>, vector<1x32x8xbf16>
    %15 = vector.shape_cast %14 : vector<1x32x8xbf16> to vector<32x8xbf16>
    %cst_13 = arith.constant dense<0.000000e+00> : vector<8x8xf32>
    %16 = tpu.matmul %4, %15, %cst_13 {dimension_numbers = #tpu.dot_dimension_numbers<[1], [0], [0], [1], [0, 0, 1, 1], [], []>} : vector<8x32xbf16>, vector<32x8xbf16>, vector<8x8xf32> -> vector<8x8xf32>
    %c0_14 = arith.constant 0 : index
    %c0_15 = arith.constant 0 : index
    %c0_16 = arith.constant 0 : index
    %17 = vector.load %arg7[%c0_14, %c0_15, %c0_16] : memref<1x1x8xf32, #tpu.memory_space<vmem>>, vector<1x1x8xf32>
    %18 = vector.shape_cast %17 : vector<1x1x8xf32> to vector<1x8xf32>
    %19 = vector.broadcast %18 : vector<1x8xf32> to vector<8x8xf32>
    %20 = arith.addf %16, %19 : vector<8x8xf32>
    %c0_17 = arith.constant 0 : index
    %c0_18 = arith.constant 0 : index
    %c0_19 = arith.constant 0 : index
    %21 = vector.load %arg5[%c0_17, %c0_18, %c0_19] : memref<1x32x8xbf16, #tpu.memory_space<vmem>>, vector<1x32x8xbf16>
    %22 = vector.shape_cast %21 : vector<1x32x8xbf16> to vector<32x8xbf16>
    %cst_20 = arith.constant dense<0.000000e+00> : vector<8x8xf32>
    %23 = tpu.matmul %4, %22, %cst_20 {dimension_numbers = #tpu.dot_dimension_numbers<[1], [0], [0], [1], [0, 0, 1, 1], [], []>} : vector<8x32xbf16>, vector<32x8xbf16>, vector<8x8xf32> -> vector<8x8xf32>
    %c0_21 = arith.constant 0 : index
    %c0_22 = arith.constant 0 : index
    %c0_23 = arith.constant 0 : index
    %24 = vector.load %arg8[%c0_21, %c0_22, %c0_23] : memref<1x1x8xf32, #tpu.memory_space<vmem>>, vector<1x1x8xf32>
    %25 = vector.shape_cast %24 : vector<1x1x8xf32> to vector<1x8xf32>
    %26 = vector.broadcast %25 : vector<1x8xf32> to vector<8x8xf32>
    %27 = arith.addf %23, %26 : vector<8x8xf32>
    %28 = arith.truncf %13 : vector<8x8xf32> to vector<8x8xbf16>
    %29 = vector.shape_cast %28 : vector<8x8xbf16> to vector<1x8x8xbf16>
    %30 = arith.truncf %20 : vector<8x8xf32> to vector<8x8xbf16>
    %31 = vector.shape_cast %30 : vector<8x8xbf16> to vector<1x8x8xbf16>
    %32 = arith.truncf %27 : vector<8x8xf32> to vector<8x8xbf16>
    %33 = vector.shape_cast %32 : vector<8x8xbf16> to vector<1x8x8xbf16>
    "tpu.trace_start"() <{level = 10 : i32, message = "bqd,bkd->bqk"}> : () -> ()
    %cst_24 = arith.constant dense<0.000000e+00> : vector<1x8x8xf32>
    %34 = tpu.matmul %29, %31, %cst_24 {dimension_numbers = #tpu.dot_dimension_numbers<[2], [2], [1], [1], [0, 0, 0, 1, 1, 1], [0], [0]>} : vector<1x8x8xbf16>, vector<1x8x8xbf16>, vector<1x8x8xf32> -> vector<1x8x8xf32>
    "tpu.trace_stop"() : () -> ()
    %cst_25 = arith.constant dense<0xFF800000> : vector<1x8xf32>
    %35 = vector.multi_reduction <maximumf>, %34, %cst_25 [2] : vector<1x8x8xf32> to vector<1x8xf32>
    %36 = vector.shape_cast %35 : vector<1x8xf32> to vector<1x8x1xf32>
    %37 = vector.broadcast %36 : vector<1x8x1xf32> to vector<1x8x8xf32>
    %38 = arith.subf %34, %37 : vector<1x8x8xf32>
    %39 = math.exp %38 : vector<1x8x8xf32>
    %cst_26 = arith.constant dense<0.000000e+00> : vector<1x8xf32>
    %40 = vector.multi_reduction <add>, %39, %cst_26 [2] : vector<1x8x8xf32> to vector<1x8xf32>
    %41 = vector.shape_cast %40 : vector<1x8xf32> to vector<1x8x1xf32>
    %42 = tpu.reciprocal %41 {approx = true} : vector<1x8x1xf32> -> vector<1x8x1xf32>
    %43 = vector.broadcast %42 : vector<1x8x1xf32> to vector<1x8x8xf32>
    %44 = arith.mulf %39, %43 : vector<1x8x8xf32>
    %45 = arith.truncf %44 : vector<1x8x8xf32> to vector<1x8x8xbf16>
    "tpu.trace_start"() <{level = 10 : i32, message = "bqk,bkd->bqd"}> : () -> ()
    %cst_27 = arith.constant dense<0.000000e+00> : vector<1x8x8xf32>
    %46 = tpu.matmul %45, %33, %cst_27 {dimension_numbers = #tpu.dot_dimension_numbers<[2], [1], [1], [2], [0, 0, 0, 1, 1, 2], [0], [0]>} : vector<1x8x8xbf16>, vector<1x8x8xbf16>, vector<1x8x8xf32> -> vector<1x8x8xf32>
    "tpu.trace_stop"() : () -> ()
    %c0_28 = arith.constant 0 : index
    %c0_29 = arith.constant 0 : index
    %47 = vector.load %arg16[%c0_28, %c0_29] : memref<8x32xf32, #tpu.memory_space<vmem>>, vector<8x32xf32>
    %48 = vector.shape_cast %46 : vector<1x8x8xf32> to vector<8x8xf32>
    %49 = arith.truncf %48 : vector<8x8xf32> to vector<8x8xbf16>
    %c0_30 = arith.constant 0 : index
    %c0_31 = arith.constant 0 : index
    %c0_32 = arith.constant 0 : index
    %50 = vector.load %arg9[%c0_30, %c0_31, %c0_32] : memref<1x8x32xbf16, #tpu.memory_space<vmem>>, vector<1x8x32xbf16>
    %51 = vector.shape_cast %50 : vector<1x8x32xbf16> to vector<8x32xbf16>
    %cst_33 = arith.constant dense<0.000000e+00> : vector<8x32xf32>
    %52 = tpu.matmul %49, %51, %cst_33 {dimension_numbers = #tpu.dot_dimension_numbers<[1], [0], [0], [1], [0, 0, 1, 1], [], []>} : vector<8x8xbf16>, vector<8x32xbf16>, vector<8x32xf32> -> vector<8x32xf32>
    %53 = arith.addf %47, %52 : vector<8x32xf32>
    %c0_34 = arith.constant 0 : index
    %c0_35 = arith.constant 0 : index
    %54 = vector.load %arg16[%c0_34, %c0_35] : memref<8x32xf32, #tpu.memory_space<vmem>>, vector<8x32xf32>
    tpu.vector_store %arg16[%c0_34, %c0_35], %53 {strides = array<i32>} : memref<8x32xf32, #tpu.memory_space<vmem>>, vector<8x32xf32>,
    %c3_i32 = arith.constant 3 : i32
    %55 = arith.cmpi eq, %arg1, %c3_i32 : i32
    %56 = arith.extui %55 : i1 to i32
    %c0_i32_36 = arith.constant 0 : i32
    %57 = arith.cmpi ne, %56, %c0_i32_36 : i32
    scf.if %57 {
      %c0_37 = arith.constant 0 : index
      %c0_38 = arith.constant 0 : index
      %58 = vector.load %arg16[%c0_37, %c0_38] : memref<8x32xf32, #tpu.memory_space<vmem>>, vector<8x32xf32>
      %c0_39 = arith.constant 0 : index
      %c0_40 = arith.constant 0 : index
      %59 = vector.load %arg10[%c0_39, %c0_40] : memref<1x32xf32, #tpu.memory_space<vmem>>, vector<1x32xf32>
      %60 = vector.broadcast %59 : vector<1x32xf32> to vector<8x32xf32>
      %61 = arith.addf %58, %60 : vector<8x32xf32>
      %cst_41 = arith.constant dense<0.000000e+00> : vector<8xf32>
      %62 = vector.multi_reduction <add>, %61, %cst_41 [1] : vector<8x32xf32> to vector<8xf32>
      %63 = vector.shape_cast %62 : vector<8xf32> to vector<8x1xf32>
      %cst_42 = arith.constant 3.200000e+01 : f32
      %64 = vector.broadcast %cst_42 : f32 to vector<8x1xf32>
      %65 = arith.divf %63, %64 : vector<8x1xf32>
      %66 = vector.broadcast %65 : vector<8x1xf32> to vector<8x32xf32>
      %67 = arith.subf %61, %66 : vector<8x32xf32>
      %68 = arith.mulf %67, %67 : vector<8x32xf32>
      %cst_43 = arith.constant dense<0.000000e+00> : vector<8xf32>
      %69 = vector.multi_reduction <add>, %68, %cst_43 [1] : vector<8x32xf32> to vector<8xf32>
      %70 = vector.shape_cast %69 : vector<8xf32> to vector<8x1xf32>
      %cst_44 = arith.constant 3.200000e+01 : f32
      %71 = vector.broadcast %cst_44 : f32 to vector<8x1xf32>
      %72 = arith.divf %70, %71 : vector<8x1xf32>
      %73 = vector.broadcast %65 : vector<8x1xf32> to vector<8x32xf32>
      %74 = arith.subf %61, %73 : vector<8x32xf32>
      %cst_45 = arith.constant 9.99999974E-6 : f32
      %75 = vector.broadcast %cst_45 : f32 to vector<8x1xf32>
      %76 = arith.addf %72, %75 : vector<8x1xf32>
      %77 = math.rsqrt %76 : vector<8x1xf32>
      %78 = vector.broadcast %77 : vector<8x1xf32> to vector<8x32xf32>
      %79 = arith.mulf %74, %78 : vector<8x32xf32>
      %c0_46 = arith.constant 0 : index
      %c0_47 = arith.constant 0 : index
      %80 = vector.load %arg11[%c0_46, %c0_47] : memref<1x32xf32, #tpu.memory_space<vmem>>, vector<1x32xf32>
      %81 = vector.broadcast %80 : vector<1x32xf32> to vector<8x32xf32>
      %82 = arith.mulf %79, %81 : vector<8x32xf32>
      %c0_48 = arith.constant 0 : index
      %c0_49 = arith.constant 0 : index
      %83 = vector.load %arg12[%c0_48, %c0_49] : memref<1x32xf32, #tpu.memory_space<vmem>>, vector<1x32xf32>
      %84 = vector.broadcast %83 : vector<1x32xf32> to vector<8x32xf32>
      %85 = arith.addf %82, %84 : vector<8x32xf32>
      %c0_50 = arith.constant 0 : index
      %c0_51 = arith.constant 0 : index
      %86 = vector.load %arg13[%c0_50, %c0_51] : memref<1x32xf32, #tpu.memory_space<vmem>>, vector<1x32xf32>
      %87 = vector.broadcast %86 : vector<1x32xf32> to vector<8x32xf32>
      %88 = arith.mulf %85, %87 : vector<8x32xf32>
      %cst_52 = arith.constant dense<0.000000e+00> : vector<8xf32>
      %89 = vector.multi_reduction <add>, %88, %cst_52 [1] : vector<8x32xf32> to vector<8xf32>
      %90 = vector.shape_cast %89 : vector<8xf32> to vector<8x1xf32>
      %91 = vector.shape_cast %90 : vector<8x1xf32> to vector<1x8x1xf32>
      %cst_53 = arith.constant dense<0xFF800000> : vector<1x1xf32>
      %92 = vector.multi_reduction <maximumf>, %91, %cst_53 [1] : vector<1x8x1xf32> to vector<1x1xf32>
      %93 = vector.shape_cast %92 : vector<1x1xf32> to vector<1x1x1xf32>
      %94 = vector.broadcast %93 : vector<1x1x1xf32> to vector<1x8x1xf32>
      %95 = arith.subf %91, %94 : vector<1x8x1xf32>
      %96 = math.exp %95 : vector<1x8x1xf32>
      %cst_54 = arith.constant dense<0.000000e+00> : vector<1x1xf32>
      %97 = vector.multi_reduction <add>, %96, %cst_54 [1] : vector<1x8x1xf32> to vector<1x1xf32>
      %98 = vector.shape_cast %97 : vector<1x1xf32> to vector<1x1x1xf32>
      %99 = vector.broadcast %98 : vector<1x1x1xf32> to vector<1x8x1xf32>
      %100 = arith.divf %96, %99 : vector<1x8x1xf32>
      %101 = vector.shape_cast %61 : vector<8x32xf32> to vector<1x8x32xf32>
      %102 = vector.broadcast %100 : vector<1x8x1xf32> to vector<1x8x32xf32>
      %103 = arith.mulf %101, %102 : vector<1x8x32xf32>
      %cst_55 = arith.constant dense<0.000000e+00> : vector<1x32xf32>
      %104 = vector.multi_reduction <add>, %103, %cst_55 [1] : vector<1x8x32xf32> to vector<1x32xf32>
      %c0_56 = arith.constant 0 : index
      %c0_57 = arith.constant 0 : index
      %c0_58 = arith.constant 0 : index
      %105 = vector.load %arg14[%c0_56, %c0_57, %c0_58] : memref<1x1x32xf32, #tpu.memory_space<vmem>>, vector<1x1x32xf32>
      %106 = vector.shape_cast %105 : vector<1x1x32xf32> to vector<1x32xf32>
      %107 = vector.shape_cast %104 : vector<1x32xf32> to vector<1x1x32xf32>
      tpu.vector_store %arg14[%c0_56, %c0_57, %c0_58], %107 {strides = array<i32>} : memref<1x1x32xf32, #tpu.memory_space<vmem>>, vector<1x1x32xf32>,
      %108 = vector.shape_cast %100 : vector<1x8x1xf32> to vector<1x8xf32>
      %c0_59 = arith.constant 0 : index
      %c0_60 = arith.constant 0 : index
      %c0_61 = arith.constant 0 : index
      %109 = vector.load %arg15[%c0_59, %c0_60, %c0_61] : memref<1x1x8xf32, #tpu.memory_space<vmem>>, vector<1x1x8xf32>
      %110 = vector.shape_cast %109 : vector<1x1x8xf32> to vector<1x8xf32>
      %111 = vector.shape_cast %108 : vector<1x8xf32> to vector<1x1x8xf32>
      tpu.vector_store %arg15[%c0_59, %c0_60, %c0_61], %111 {strides = array<i32>} : memref<1x1x8xf32, #tpu.memory_space<vmem>>, vector<1x1x8xf32>,
    } else {
    }
    return
  }
  func.func @transform_0(%arg0: i32, %arg1: i32) -> (i32, i32, i32) {
    %c0_i32 = arith.constant 0 : i32
    %c0_i32_0 = arith.constant 0 : i32
    %c0_i32_1 = arith.constant 0 : i32
    return %arg0, %c0_i32, %c0_i32_0 : i32, i32, i32
  }
  func.func @transform_1(%arg0: i32, %arg1: i32) -> (i32, i32, i32) {
    %c0_i32 = arith.constant 0 : i32
    %c0_i32_0 = arith.constant 0 : i32
    %c0_i32_1 = arith.constant 0 : i32
    return %arg1, %c0_i32, %c0_i32_0 : i32, i32, i32
  }
  func.func @transform_2(%arg0: i32, %arg1: i32) -> (i32, i32, i32) {
    %c0_i32 = arith.constant 0 : i32
    %c0_i32_0 = arith.constant 0 : i32
    %c0_i32_1 = arith.constant 0 : i32
    return %arg1, %c0_i32, %c0_i32_0 : i32, i32, i32
  }
  func.func @transform_3(%arg0: i32, %arg1: i32) -> (i32, i32, i32) {
    %c0_i32 = arith.constant 0 : i32
    %c0_i32_0 = arith.constant 0 : i32
    %c0_i32_1 = arith.constant 0 : i32
    return %arg1, %c0_i32, %c0_i32_0 : i32, i32, i32
  }
  func.func @transform_4(%arg0: i32, %arg1: i32) -> (i32, i32, i32) {
    %c0_i32 = arith.constant 0 : i32
    %c0_i32_0 = arith.constant 0 : i32
    %c0_i32_1 = arith.constant 0 : i32
    return %arg1, %c0_i32, %c0_i32_0 : i32, i32, i32
  }
  func.func @transform_5(%arg0: i32, %arg1: i32) -> (i32, i32, i32) {
    %c0_i32 = arith.constant 0 : i32
    %c0_i32_0 = arith.constant 0 : i32
    %c0_i32_1 = arith.constant 0 : i32
    return %arg1, %c0_i32, %c0_i32_0 : i32, i32, i32
  }
  func.func @transform_6(%arg0: i32, %arg1: i32) -> (i32, i32, i32) {
    %c0_i32 = arith.constant 0 : i32
    %c0_i32_0 = arith.constant 0 : i32
    %c0_i32_1 = arith.constant 0 : i32
    return %arg1, %c0_i32, %c0_i32_0 : i32, i32, i32
  }
  func.func @transform_7(%arg0: i32, %arg1: i32) -> (i32, i32, i32) {
    %c0_i32 = arith.constant 0 : i32
    %c0_i32_0 = arith.constant 0 : i32
    %c0_i32_1 = arith.constant 0 : i32
    return %arg1, %c0_i32, %c0_i32_0 : i32, i32, i32
  }
  func.func @transform_8(%arg0: i32, %arg1: i32) -> (i32, i32) {
    %c0_i32 = arith.constant 0 : i32
    %c0_i32_0 = arith.constant 0 : i32
    %c0_i32_1 = arith.constant 0 : i32
    return %c0_i32, %c0_i32_0 : i32, i32
  }
  func.func @transform_9(%arg0: i32, %arg1: i32) -> (i32, i32) {
    %c0_i32 = arith.constant 0 : i32
    %c0_i32_0 = arith.constant 0 : i32
    %c0_i32_1 = arith.constant 0 : i32
    return %c0_i32, %c0_i32_0 : i32, i32
  }
  func.func @transform_10(%arg0: i32, %arg1: i32) -> (i32, i32) {
    %c0_i32 = arith.constant 0 : i32
    %c0_i32_0 = arith.constant 0 : i32
    %c0_i32_1 = arith.constant 0 : i32
    return %c0_i32, %c0_i32_0 : i32, i32
  }
  func.func @transform_11(%arg0: i32, %arg1: i32) -> (i32, i32) {
    %c0_i32 = arith.constant 0 : i32
    %c0_i32_0 = arith.constant 0 : i32
    %c0_i32_1 = arith.constant 0 : i32
    return %c0_i32, %c0_i32_0 : i32, i32
  }
  func.func @transform_12(%arg0: i32, %arg1: i32) -> (i32, i32, i32) {
    %c0_i32 = arith.constant 0 : i32
    %c0_i32_0 = arith.constant 0 : i32
    %c0_i32_1 = arith.constant 0 : i32
    return %arg0, %c0_i32, %c0_i32_0 : i32, i32, i32
  }
  func.func @transform_13(%arg0: i32, %arg1: i32) -> (i32, i32, i32) {
    %c0_i32 = arith.constant 0 : i32
    %c0_i32_0 = arith.constant 0 : i32
    %c0_i32_1 = arith.constant 0 : i32
    return %arg0, %c0_i32, %c0_i32_0 : i32, i32, i32
  }
}

</mosaic_0001>

<llo_original>
// kernel: tpu_custom_call.1
$region0: #{tpu_custom_call.1}
  #allocation0 [shape = 'u32[]', space=smem, size = 0x4, offset = 0x4, fixed_abs, tag = 'smem constant byte address 0x4 - core index']
  #allocation1 [shape = 'u32[72,128]{1,0:T(1,128)}', space=vmem, size = 0x9000, scoped, tag = 'internal scratch']
  #allocation2 [shape = 'f32[8,32]{1,0:T(8,128)}', space=vmem, size = 0x1000, scoped, tag = 'scratch operand']
  %s0 = inlined_call_operand.vmem [shape: bf16[2,8,32], index: 0, kind: input, shape index: {}]
  %s1 = inlined_call_operand.vmem [shape: bf16[4,32,8], index: 1, kind: input, shape index: {}]
  %s2 = inlined_call_operand.vmem [shape: bf16[4,32,8], index: 2, kind: input, shape index: {}]
  %s3 = inlined_call_operand.vmem [shape: bf16[4,32,8], index: 3, kind: input, shape index: {}]
  %s4 = inlined_call_operand.vmem [shape: f32[4,1,8], index: 4, kind: input, shape index: {}]
  %s5 = inlined_call_operand.vmem [shape: f32[4,1,8], index: 5, kind: input, shape index: {}]
  %s6 = inlined_call_operand.vmem [shape: f32[4,1,8], index: 6, kind: input, shape index: {}]
  %s7 = inlined_call_operand.vmem [shape: bf16[4,8,32], index: 7, kind: input, shape index: {}]
  %s8 = inlined_call_operand.vmem [shape: f32[1,32], index: 8, kind: input, shape index: {}]
  %s9 = inlined_call_operand.vmem [shape: f32[1,32], index: 9, kind: input, shape index: {}]
  %s10 = inlined_call_operand.vmem [shape: f32[1,32], index: 10, kind: input, shape index: {}]
  %s11 = inlined_call_operand.vmem [shape: f32[1,32], index: 11, kind: input, shape index: {}]
  %s12 = inlined_call_operand.hbm [shape: f32[2,1,32], index: 12, kind: output, shape index: {0}]
  %s13 = inlined_call_operand.hbm [shape: f32[2,1,8], index: 13, kind: output, shape index: {1}]
  %14 = xla_tuple %s12, %s13
  %s15 = sld [smem:[#allocation0]]
  $region97: #{tpu_custom_call.1} parent=0
    _
  %s17 = ssub.s32 1, %s15
  %s18 = scalar_select 0, %s17, %s15
  $region1: #{tpu_custom_call.1} parent=0
    #allocation3 [shape = 'u8[1024]{0}', space=vmem, size = 0x400, scoped, tag = 'output window, operand 0']
    #allocation4 [shape = 's32[2]{0}', space=sflag, size = 0x8, scoped, tag = 'scoped memory for tpu_custom_call.1']
    #allocation5 [shape = 'u8[1024]{0}', space=vmem, size = 0x400, scoped, tag = 'output window, operand 1']
    #allocation6 [shape = 's32[2]{0}', space=sflag, size = 0x8, scoped, tag = 'scoped memory for tpu_custom_call.1']
    %19 = vsyncpa [#allocation4], 0
    %s20 = scalar_lea.sflag [#allocation4], 1
    %21 = vsyncpa %s20, 0
    %22 = vsyncpa [#allocation6], 0
    %s23 = scalar_lea.sflag [#allocation6], 1
    %24 = vsyncpa %s23, 0
    loop: start=0, step=1, limit=10
    $region2: #{tpu_custom_call.1} parent=1 // loop_pre_header
      _
    $region3: #{tpu_custom_call.1} parent=1 // loop_header
      %s26 = sphi 0, %s30
      %p27 = scmp.ge.s32.totalorder %s26, 10
      %s33 = sphi 0, %s45
      %s34 = sphi 0, %s41
      %s35 = sphi 0, %s33
      %s36 = sphi 0, %s34
      %s37 = sphi 0, %s35
      %s38 = sphi 0, %s36
      %s48 = sphi 0, %s50
      %s51 = sphi 0, %s48
      %s52 = sphi 0, %s51
      %s68 = sphi 0, %s52
      %s74 = sphi 0, %s76
      %s77 = sphi 0, %s74
      %s78 = sphi 0, %s77
      %s94 = sphi 0, %s78
      %s100 = sphi 0, %s102
      %s103 = sphi 0, %s100
      %s104 = sphi 0, %s103
      %s120 = sphi 0, %s104
      %s126 = sphi 0, %s128
      %s129 = sphi 0, %s126
      %s130 = sphi 0, %s129
      %s146 = sphi 0, %s130
      %s152 = sphi 0, %s154
      %s155 = sphi 0, %s152
      %s156 = sphi 0, %s155
      %s172 = sphi 0, %s156
      %s178 = sphi 0, %s180
      %s181 = sphi 0, %s178
      %s182 = sphi 0, %s181
      %s198 = sphi 0, %s182
      %s204 = sphi 0, %s206
      %s207 = sphi 0, %s204
      %s208 = sphi 0, %s207
      %s224 = sphi 0, %s208
      %s230 = sphi 0, %s232
      %s233 = sphi 0, %s230
      %s234 = sphi 0, %s233
      %s250 = sphi 0, %s234
      %s254 = sphi 0, %s254
      %s256 = sphi 0, %s254
      %s257 = sphi 0, %s256
      %s271 = sphi 0, %s257
      %s275 = sphi 0, %s275
      %s277 = sphi 0, %s275
      %s278 = sphi 0, %s277
      %s292 = sphi 0, %s278
      %s296 = sphi 0, %s296
      %s298 = sphi 0, %s296
      %s299 = sphi 0, %s298
      %s313 = sphi 0, %s299
      %s317 = sphi 0, %s317
      %s319 = sphi 0, %s317
      %s320 = sphi 0, %s319
      %s334 = sphi 0, %s320
      %s340 = sphi 0, %s342
      %s343 = sphi 0, %s340
      %s344 = sphi 0, %s343
      %s360 = sphi 0, %s344
      %s366 = sphi 0, %s368
      %s369 = sphi 0, %s366
      %s370 = sphi 0, %s369
      %s386 = sphi 0, %s370
    $region4: #{tpu_custom_call.1} parent=1 // loop_header_branch
      %29 = sbr.rel (%p27) target = $region8
    $region5: #{tpu_custom_call.1} parent=1 // loop_body
      %s31 = ssub.s32 %s26, 1
      %s32 = ssub.s32 %s26, 2
      %s39 = sadd.s32 1, %s34
      %p40 = scmp.ge.s32.totalorder %s39, 4
      %s41 = scalar_select %p40, 0, %s39
      %s42 = sadd.s32 1, %s33
      %s43 = scalar_select %p40, %s42, %s33
      %p44 = scmp.ge.s32.totalorder %s43, 2
      %s45 = scalar_select %p44, 0, %s43
      %s46 = ssub.s32 %s33, %s45
      %p47 = scmp.eq.s32.totalorder %s46, 0
      %s49 = sadd.s32 %s48, 1
      %s50 = scalar_select %p47, %s48, %s49
      %p53 = pneg %p47
      %p54 = scmp.eq.s32.totalorder %s26, 7
      %p55 = por %p53, %p54
      %p56 = scmp.ne.s32.totalorder %s48, %s51
      %p57 = scmp.eq.s32.totalorder %s26, 0
      %p58 = por %p56, %p57
      %p59 = scmp.ne.s32.totalorder %s48, %s51
      %p60 = scmp.eq.s32.totalorder %s31, 7
      %p61 = por %p59, %p60
      %p62 = scmp.ne.s32.totalorder %s51, %s52
      %p63 = scmp.eq.s32.totalorder %s31, 0
      %p64 = por %p62, %p63
      %p65 = scmp.ne.s32.totalorder %s51, %s52
      %p66 = scmp.eq.s32.totalorder %s32, 7
      %p67 = por %p65, %p66
      %p69 = scmp.ne.s32.totalorder %s52, %s68
      %p70 = scmp.eq.s32.totalorder %s32, 0
      %p71 = por %p69, %p70
      %s72 = ssub.s32 %s34, %s41
      %p73 = scmp.eq.s32.totalorder %s72, 0
      %s75 = sadd.s32 %s74, 1
      %s76 = scalar_select %p73, %s74, %s75
      %p79 = pneg %p73
      %p80 = scmp.eq.s32.totalorder %s26, 7
      %p81 = por %p79, %p80
      %p82 = scmp.ne.s32.totalorder %s74, %s77
      %p83 = scmp.eq.s32.totalorder %s26, 0
      %p84 = por %p82, %p83
      %p85 = scmp.ne.s32.totalorder %s74, %s77
      %p86 = scmp.eq.s32.totalorder %s31, 7
      %p87 = por %p85, %p86
      %p88 = scmp.ne.s32.totalorder %s77, %s78
      %p89 = scmp.eq.s32.totalorder %s31, 0
      %p90 = por %p88, %p89
      %p91 = scmp.ne.s32.totalorder %s77, %s78
      %p92 = scmp.eq.s32.totalorder %s32, 7
      %p93 = por %p91, %p92
      %p95 = scmp.ne.s32.totalorder %s78, %s94
      %p96 = scmp.eq.s32.totalorder %s32, 0
      %p97 = por %p95, %p96
      %s98 = ssub.s32 %s34, %s41
      %p99 = scmp.eq.s32.totalorder %s98, 0
      %s101 = sadd.s32 %s100, 1
      %s102 = scalar_select %p99, %s100, %s101
      %p105 = pneg %p99
      %p106 = scmp.eq.s32.totalorder %s26, 7
      %p107 = por %p105, %p106
      %p108 = scmp.ne.s32.totalorder %s100, %s103
      %p109 = scmp.eq.s32.totalorder %s26, 0
      %p110 = por %p108, %p109
      %p111 = scmp.ne.s32.totalorder %s100, %s103
      %p112 = scmp.eq.s32.totalorder %s31, 7
      %p113 = por %p111, %p112
      %p114 = scmp.ne.s32.totalorder %s103, %s104
      %p115 = scmp.eq.s32.totalorder %s31, 0
      %p116 = por %p114, %p115
      %p117 = scmp.ne.s32.totalorder %s103, %s104
      %p118 = scmp.eq.s32.totalorder %s32, 7
      %p119 = por %p117, %p118
      %p121 = scmp.ne.s32.totalorder %s104, %s120
      %p122 = scmp.eq.s32.totalorder %s32, 0
      %p123 = por %p121, %p122
      %s124 = ssub.s32 %s34, %s41
      %p125 = scmp.eq.s32.totalorder %s124, 0
      %s127 = sadd.s32 %s126, 1
      %s128 = scalar_select %p125, %s126, %s127
      %p131 = pneg %p125
      %p132 = scmp.eq.s32.totalorder %s26, 7
      %p133 = por %p131, %p132
      %p134 = scmp.ne.s32.totalorder %s126, %s129
      %p135 = scmp.eq.s32.totalorder %s26, 0
      %p136 = por %p134, %p135
      %p137 = scmp.ne.s32.totalorder %s126, %s129
      %p138 = scmp.eq.s32.totalorder %s31, 7
      %p139 = por %p137, %p138
      %p140 = scmp.ne.s32.totalorder %s129, %s130
      %p141 = scmp.eq.s32.totalorder %s31, 0
      %p142 = por %p140, %p141
      %p143 = scmp.ne.s32.totalorder %s129, %s130
      %p144 = scmp.eq.s32.totalorder %s32, 7
      %p145 = por %p143, %p144
      %p147 = scmp.ne.s32.totalorder %s130, %s146
      %p148 = scmp.eq.s32.totalorder %s32, 0
      %p149 = por %p147, %p148
      %s150 = ssub.s32 %s34, %s41
      %p151 = scmp.eq.s32.totalorder %s150, 0
      %s153 = sadd.s32 %s152, 1
      %s154 = scalar_select %p151, %s152, %s153
      %p157 = pneg %p151
      %p158 = scmp.eq.s32.totalorder %s26, 7
      %p159 = por %p157, %p158
      %p160 = scmp.ne.s32.totalorder %s152, %s155
      %p161 = scmp.eq.s32.totalorder %s26, 0
      %p162 = por %p160, %p161
      %p163 = scmp.ne.s32.totalorder %s152, %s155
      %p164 = scmp.eq.s32.totalorder %s31, 7
      %p165 = por %p163, %p164
      %p166 = scmp.ne.s32.totalorder %s155, %s156
      %p167 = scmp.eq.s32.totalorder %s31, 0
      %p168 = por %p166, %p167
      %p169 = scmp.ne.s32.totalorder %s155, %s156
      %p170 = scmp.eq.s32.totalorder %s32, 7
      %p171 = por %p169, %p170
      %p173 = scmp.ne.s32.totalorder %s156, %s172
      %p174 = scmp.eq.s32.totalorder %s32, 0
      %p175 = por %p173, %p174
      %s176 = ssub.s32 %s34, %s41
      %p177 = scmp.eq.s32.totalorder %s176, 0
      %s179 = sadd.s32 %s178, 1
      %s180 = scalar_select %p177, %s178, %s179
      %p183 = pneg %p177
      %p184 = scmp.eq.s32.totalorder %s26, 7
      %p185 = por %p183, %p184
      %p186 = scmp.ne.s32.totalorder %s178, %s181
      %p187 = scmp.eq.s32.totalorder %s26, 0
      %p188 = por %p186, %p187
      %p189 = scmp.ne.s32.totalorder %s178, %s181
      %p190 = scmp.eq.s32.totalorder %s31, 7
      %p191 = por %p189, %p190
      %p192 = scmp.ne.s32.totalorder %s181, %s182
      %p193 = scmp.eq.s32.totalorder %s31, 0
      %p194 = por %p192, %p193
      %p195 = scmp.ne.s32.totalorder %s181, %s182
      %p196 = scmp.eq.s32.totalorder %s32, 7
      %p197 = por %p195, %p196
      %p199 = scmp.ne.s32.totalorder %s182, %s198
      %p200 = scmp.eq.s32.totalorder %s32, 0
      %p201 = por %p199, %p200
      %s202 = ssub.s32 %s34, %s41
      %p203 = scmp.eq.s32.totalorder %s202, 0
      %s205 = sadd.s32 %s204, 1
      %s206 = scalar_select %p203, %s204, %s205
      %p209 = pneg %p203
      %p210 = scmp.eq.s32.totalorder %s26, 7
      %p211 = por %p209, %p210
      %p212 = scmp.ne.s32.totalorder %s204, %s207
      %p213 = scmp.eq.s32.totalorder %s26, 0
      %p214 = por %p212, %p213
      %p215 = scmp.ne.s32.totalorder %s204, %s207
      %p216 = scmp.eq.s32.totalorder %s31, 7
      %p217 = por %p215, %p216
      %p218 = scmp.ne.s32.totalorder %s207, %s208
      %p219 = scmp.eq.s32.totalorder %s31, 0
      %p220 = por %p218, %p219
      %p221 = scmp.ne.s32.totalorder %s207, %s208
      %p222 = scmp.eq.s32.totalorder %s32, 7
      %p223 = por %p221, %p222
      %p225 = scmp.ne.s32.totalorder %s208, %s224
      %p226 = scmp.eq.s32.totalorder %s32, 0
      %p227 = por %p225, %p226
      %s228 = ssub.s32 %s34, %s41
      %p229 = scmp.eq.s32.totalorder %s228, 0
      %s231 = sadd.s32 %s230, 1
      %s232 = scalar_select %p229, %s230, %s231
      %p235 = pneg %p229
      %p236 = scmp.eq.s32.totalorder %s26, 7
      %p237 = por %p235, %p236
      %p238 = scmp.ne.s32.totalorder %s230, %s233
      %p239 = scmp.eq.s32.totalorder %s26, 0
      %p240 = por %p238, %p239
      %p241 = scmp.ne.s32.totalorder %s230, %s233
      %p242 = scmp.eq.s32.totalorder %s31, 7
      %p243 = por %p241, %p242
      %p244 = scmp.ne.s32.totalorder %s233, %s234
      %p245 = scmp.eq.s32.totalorder %s31, 0
      %p246 = por %p244, %p245
      %p247 = scmp.ne.s32.totalorder %s233, %s234
      %p248 = scmp.eq.s32.totalorder %s32, 7
      %p249 = por %p247, %p248
      %p251 = scmp.ne.s32.totalorder %s234, %s250
      %p252 = scmp.eq.s32.totalorder %s32, 0
      %p253 = por %p251, %p252
      %s255 = sadd.s32 %s254, 1
      %p258 = scmp.eq.s32.totalorder %s26, 7
      %p259 = scmp.ne.s32.totalorder %s254, %s256
      %p260 = scmp.eq.s32.totalorder %s26, 0
      %p261 = por %p259, %p260
      %p262 = scmp.ne.s32.totalorder %s254, %s256
      %p263 = scmp.eq.s32.totalorder %s31, 7
      %p264 = por %p262, %p263
      %p265 = scmp.ne.s32.totalorder %s256, %s257
      %p266 = scmp.eq.s32.totalorder %s31, 0
      %p267 = por %p265, %p266
      %p268 = scmp.ne.s32.totalorder %s256, %s257
      %p269 = scmp.eq.s32.totalorder %s32, 7
      %p270 = por %p268, %p269
      %p272 = scmp.ne.s32.totalorder %s257, %s271
      %p273 = scmp.eq.s32.totalorder %s32, 0
      %p274 = por %p272, %p273
      %s276 = sadd.s32 %s275, 1
      %p279 = scmp.eq.s32.totalorder %s26, 7
      %p280 = scmp.ne.s32.totalorder %s275, %s277
      %p281 = scmp.eq.s32.totalorder %s26, 0
      %p282 = por %p280, %p281
      %p283 = scmp.ne.s32.totalorder %s275, %s277
      %p284 = scmp.eq.s32.totalorder %s31, 7
      %p285 = por %p283, %p284
      %p286 = scmp.ne.s32.totalorder %s277, %s278
      %p287 = scmp.eq.s32.totalorder %s31, 0
      %p288 = por %p286, %p287
      %p289 = scmp.ne.s32.totalorder %s277, %s278
      %p290 = scmp.eq.s32.totalorder %s32, 7
      %p291 = por %p289, %p290
      %p293 = scmp.ne.s32.totalorder %s278, %s292
      %p294 = scmp.eq.s32.totalorder %s32, 0
      %p295 = por %p293, %p294
      %s297 = sadd.s32 %s296, 1
      %p300 = scmp.eq.s32.totalorder %s26, 7
      %p301 = scmp.ne.s32.totalorder %s296, %s298
      %p302 = scmp.eq.s32.totalorder %s26, 0
      %p303 = por %p301, %p302
      %p304 = scmp.ne.s32.totalorder %s296, %s298
      %p305 = scmp.eq.s32.totalorder %s31, 7
      %p306 = por %p304, %p305
      %p307 = scmp.ne.s32.totalorder %s298, %s299
      %p308 = scmp.eq.s32.totalorder %s31, 0
      %p309 = por %p307, %p308
      %p310 = scmp.ne.s32.totalorder %s298, %s299
      %p311 = scmp.eq.s32.totalorder %s32, 7
      %p312 = por %p310, %p311
      %p314 = scmp.ne.s32.totalorder %s299, %s313
      %p315 = scmp.eq.s32.totalorder %s32, 0
      %p316 = por %p314, %p315
      %s318 = sadd.s32 %s317, 1
      %p321 = scmp.eq.s32.totalorder %s26, 7
      %p322 = scmp.ne.s32.totalorder %s317, %s319
      %p323 = scmp.eq.s32.totalorder %s26, 0
      %p324 = por %p322, %p323
      %p325 = scmp.ne.s32.totalorder %s317, %s319
      %p326 = scmp.eq.s32.totalorder %s31, 7
      %p327 = por %p325, %p326
      %p328 = scmp.ne.s32.totalorder %s319, %s320
      %p329 = scmp.eq.s32.totalorder %s31, 0
      %p330 = por %p328, %p329
      %p331 = scmp.ne.s32.totalorder %s319, %s320
      %p332 = scmp.eq.s32.totalorder %s32, 7
      %p333 = por %p331, %p332
      %p335 = scmp.ne.s32.totalorder %s320, %s334
      %p336 = scmp.eq.s32.totalorder %s32, 0
      %p337 = por %p335, %p336
      %s338 = ssub.s32 %s33, %s45
      %p339 = scmp.eq.s32.totalorder %s338, 0
      %s341 = sadd.s32 %s340, 1
      %s342 = scalar_select %p339, %s340, %s341
      %p345 = pneg %p339
      %p346 = scmp.eq.s32.totalorder %s26, 7
      %p347 = por %p345, %p346
      %p348 = scmp.ne.s32.totalorder %s340, %s343
      %p349 = scmp.eq.s32.totalorder %s26, 0
      %p350 = por %p348, %p349
      %p351 = scmp.ne.s32.totalorder %s340, %s343
      %p352 = scmp.eq.s32.totalorder %s31, 7
      %p353 = por %p351, %p352
      %p354 = scmp.ne.s32.totalorder %s343, %s344
      %p355 = scmp.eq.s32.totalorder %s31, 0
      %p356 = por %p354, %p355
      %p357 = scmp.ne.s32.totalorder %s343, %s344
      %p358 = scmp.eq.s32.totalorder %s32, 7
      %p359 = por %p357, %p358
      %p361 = scmp.ne.s32.totalorder %s344, %s360
      %p362 = scmp.eq.s32.totalorder %s32, 0
      %p363 = por %p361, %p362
      %s364 = ssub.s32 %s33, %s45
      %p365 = scmp.eq.s32.totalorder %s364, 0
      %s367 = sadd.s32 %s366, 1
      %s368 = scalar_select %p365, %s366, %s367
      %p371 = pneg %p365
      %p372 = scmp.eq.s32.totalorder %s26, 7
      %p373 = por %p371, %p372
      %p374 = scmp.ne.s32.totalorder %s366, %s369
      %p375 = scmp.eq.s32.totalorder %s26, 0
      %p376 = por %p374, %p375
      %p377 = scmp.ne.s32.totalorder %s366, %s369
      %p378 = scmp.eq.s32.totalorder %s31, 7
      %p379 = por %p377, %p378
      %p380 = scmp.ne.s32.totalorder %s369, %s370
      %p381 = scmp.eq.s32.totalorder %s31, 0
      %p382 = por %p380, %p381
      %p383 = scmp.ne.s32.totalorder %s369, %s370
      %p384 = scmp.eq.s32.totalorder %s32, 7
      %p385 = por %p383, %p384
      %p387 = scmp.ne.s32.totalorder %s370, %s386
      %p388 = scmp.eq.s32.totalorder %s32, 0
      %p389 = por %p387, %p388
      %p390 = scmp.le.s32.totalorder 1, %s26
      %p391 = scmp.lt.s32.totalorder %s26, 9
      %p392 = pnand %p390, %p391
      %p393 = pneg %p392
      // Predicated region
      $region9: #{tpu_custom_call.1} parent=5 // pred_check
        _
      $region10: #{tpu_custom_call.1} parent=5 // pred_check_branch
        %395 = sbr.rel (%p392) target = $region12
      $region11: #{tpu_custom_call.1} parent=5 // pred_region
        %s396 = ssub.s32 %s26, 1
        // Predicated region
        $region13: #{tpu_custom_call.1} parent=11 // pred_check
          %p397 = pneg %p267
        $region14: #{tpu_custom_call.1} parent=11 // pred_check_branch
          %399 = sbr.rel (%p397) target = $region16
        $region15: #{tpu_custom_call.1} parent=11 // pred_region
          _
        $region16: #{tpu_custom_call.1} parent=11 // pred_fallthru
          _
        // Predicated region
        $region17: #{tpu_custom_call.1} parent=11 // pred_check
          %p400 = pneg %p288
        $region18: #{tpu_custom_call.1} parent=11 // pred_check_branch
          %402 = sbr.rel (%p400) target = $region20
        $region19: #{tpu_custom_call.1} parent=11 // pred_region
          _
        $region20: #{tpu_custom_call.1} parent=11 // pred_fallthru
          _
        // Predicated region
        $region21: #{tpu_custom_call.1} parent=11 // pred_check
          %p403 = pneg %p309
        $region22: #{tpu_custom_call.1} parent=11 // pred_check_branch
          %405 = sbr.rel (%p403) target = $region24
        $region23: #{tpu_custom_call.1} parent=11 // pred_region
          _
        $region24: #{tpu_custom_call.1} parent=11 // pred_fallthru
          _
        // Predicated region
        $region25: #{tpu_custom_call.1} parent=11 // pred_check
          %p406 = pneg %p330
        $region26: #{tpu_custom_call.1} parent=11 // pred_check_branch
          %408 = sbr.rel (%p406) target = $region28
        $region27: #{tpu_custom_call.1} parent=11 // pred_region
          _
        $region28: #{tpu_custom_call.1} parent=11 // pred_fallthru
          _
      $region12: #{tpu_custom_call.1} parent=5 // pred_fallthru
        _
      %p409 = scmp.lt.s32.totalorder %s26, 8
      // Predicated region
      $region29: #{tpu_custom_call.1} parent=5 // pred_check
        %p410 = pneg %p409
      $region30: #{tpu_custom_call.1} parent=5 // pred_check_branch
        %412 = sbr.rel (%p410) target = $region32
      $region31: #{tpu_custom_call.1} parent=5 // pred_region
        // Predicated region
        $region33: #{tpu_custom_call.1} parent=31 // pred_check
          %p413 = pneg %p58
        $region34: #{tpu_custom_call.1} parent=31 // pred_check_branch
          %415 = sbr.rel (%p413) target = $region36
        $region35: #{tpu_custom_call.1} parent=31 // pred_region
          %p416 = scmp.lt.s32.totalorder %s33, 1
          %s417 = scalar_select %p416, %s33, 1
          %s418 = smul.addr %s417, 4
          %s419 = scalar_lea.vmem %s0, %s418
        $region36: #{tpu_custom_call.1} parent=31 // pred_fallthru
          _
        // Predicated region
        $region37: #{tpu_custom_call.1} parent=31 // pred_check
          %p420 = pneg %p84
        $region38: #{tpu_custom_call.1} parent=31 // pred_check_branch
          %422 = sbr.rel (%p420) target = $region40
        $region39: #{tpu_custom_call.1} parent=31 // pred_region
          %p423 = scmp.lt.s32.totalorder %s34, 3
          %s424 = scalar_select %p423, %s34, 3
          %s425 = smul.addr %s424, 4
          %s426 = smul.addr %s425, 4
          %s427 = scalar_lea.vmem %s1, %s426
        $region40: #{tpu_custom_call.1} parent=31 // pred_fallthru
          _
        // Predicated region
        $region41: #{tpu_custom_call.1} parent=31 // pred_check
          %p428 = pneg %p110
        $region42: #{tpu_custom_call.1} parent=31 // pred_check_branch
          %430 = sbr.rel (%p428) target = $region44
        $region43: #{tpu_custom_call.1} parent=31 // pred_region
          %p431 = scmp.lt.s32.totalorder %s34, 3
          %s432 = scalar_select %p431, %s34, 3
          %s433 = smul.addr %s432, 4
          %s434 = smul.addr %s433, 4
          %s435 = scalar_lea.vmem %s2, %s434
        $region44: #{tpu_custom_call.1} parent=31 // pred_fallthru
          _
        // Predicated region
        $region45: #{tpu_custom_call.1} parent=31 // pred_check
          %p436 = pneg %p136
        $region46: #{tpu_custom_call.1} parent=31 // pred_check_branch
          %438 = sbr.rel (%p436) target = $region48
        $region47: #{tpu_custom_call.1} parent=31 // pred_region
          %p439 = scmp.lt.s32.totalorder %s34, 3
          %s440 = scalar_select %p439, %s34, 3
          %s441 = smul.addr %s440, 4
          %s442 = smul.addr %s441, 4
          %s443 = scalar_lea.vmem %s3, %s442
        $region48: #{tpu_custom_call.1} parent=31 // pred_fallthru
          _
        // Predicated region
        $region49: #{tpu_custom_call.1} parent=31 // pred_check
          %p444 = pneg %p162
        $region50: #{tpu_custom_call.1} parent=31 // pred_check_branch
          %446 = sbr.rel (%p444) target = $region52
        $region51: #{tpu_custom_call.1} parent=31 // pred_region
          %p447 = scmp.lt.s32.totalorder %s34, 3
          %s448 = scalar_select %p447, %s34, 3
          %s449 = scalar_lea.vmem %s4, %s448
        $region52: #{tpu_custom_call.1} parent=31 // pred_fallthru
          _
        // Predicated region
        $region53: #{tpu_custom_call.1} parent=31 // pred_check
          %p450 = pneg %p188
        $region54: #{tpu_custom_call.1} parent=31 // pred_check_branch
          %452 = sbr.rel (%p450) target = $region56
        $region55: #{tpu_custom_call.1} parent=31 // pred_region
          %p453 = scmp.lt.s32.totalorder %s34, 3
          %s454 = scalar_select %p453, %s34, 3
          %s455 = scalar_lea.vmem %s5, %s454
        $region56: #{tpu_custom_call.1} parent=31 // pred_fallthru
          _
        // Predicated region
        $region57: #{tpu_custom_call.1} parent=31 // pred_check
          %p456 = pneg %p214
        $region58: #{tpu_custom_call.1} parent=31 // pred_check_branch
          %458 = sbr.rel (%p456) target = $region60
        $region59: #{tpu_custom_call.1} parent=31 // pred_region
          %p459 = scmp.lt.s32.totalorder %s34, 3
          %s460 = scalar_select %p459, %s34, 3
          %s461 = scalar_lea.vmem %s6, %s460
        $region60: #{tpu_custom_call.1} parent=31 // pred_fallthru
          _
        // Predicated region
        $region61: #{tpu_custom_call.1} parent=31 // pred_check
          %p462 = pneg %p240
        $region62: #{tpu_custom_call.1} parent=31 // pred_check_branch
          %464 = sbr.rel (%p462) target = $region64
        $region63: #{tpu_custom_call.1} parent=31 // pred_region
          %p465 = scmp.lt.s32.totalorder %s34, 3
          %s466 = scalar_select %p465, %s34, 3
          %s467 = smul.addr %s466, 4
          %s468 = scalar_lea.vmem %s7, %s467
        $region64: #{tpu_custom_call.1} parent=31 // pred_fallthru
          _
      $region32: #{tpu_custom_call.1} parent=5 // pred_fallthru
        _
      %p469 = scmp.le.s32.totalorder 1, %s26
      %p470 = scmp.lt.s32.totalorder %s26, 9
      %p471 = pnand %p469, %p470
      %p472 = pneg %p471
      // Predicated region
      $region65: #{tpu_custom_call.1} parent=5 // pred_check
        _
      $region66: #{tpu_custom_call.1} parent=5 // pred_check_branch
        %474 = sbr.rel (%p471) target = $region68
      $region67: #{tpu_custom_call.1} parent=5 // pred_region
        %s475 = ssub.s32 %s26, 1
        %p476 = scmp.lt.s32.totalorder %s35, 1
        %s477 = scalar_select %p476, %s35, 1
        %s478 = smul.addr %s477, 4
        %s479 = scalar_lea.vmem %s0, %s478
        %p480 = pneg %p64
        %p481 = pneg %p61
        %p482 = scmp.lt.s32.totalorder %s36, 3
        %s483 = scalar_select %p482, %s36, 3
        %s484 = smul.addr %s483, 4
        %s485 = smul.addr %s484, 4
        %s486 = scalar_lea.vmem %s1, %s485
        %p487 = pneg %p90
        %p488 = pneg %p87
        %p489 = scmp.lt.s32.totalorder %s36, 3
        %s490 = scalar_select %p489, %s36, 3
        %s491 = smul.addr %s490, 4
        %s492 = smul.addr %s491, 4
        %s493 = scalar_lea.vmem %s2, %s492
        %p494 = pneg %p116
        %p495 = pneg %p113
        %p496 = scmp.lt.s32.totalorder %s36, 3
        %s497 = scalar_select %p496, %s36, 3
        %s498 = smul.addr %s497, 4
        %s499 = smul.addr %s498, 4
        %s500 = scalar_lea.vmem %s3, %s499
        %p501 = pneg %p142
        %p502 = pneg %p139
        %p503 = scmp.lt.s32.totalorder %s36, 3
        %s504 = scalar_select %p503, %s36, 3
        %s505 = scalar_lea.vmem %s4, %s504
        %p506 = pneg %p168
        %p507 = pneg %p165
        %p508 = scmp.lt.s32.totalorder %s36, 3
        %s509 = scalar_select %p508, %s36, 3
        %s510 = scalar_lea.vmem %s5, %s509
        %p511 = pneg %p194
        %p512 = pneg %p191
        %p513 = scmp.lt.s32.totalorder %s36, 3
        %s514 = scalar_select %p513, %s36, 3
        %s515 = scalar_lea.vmem %s6, %s514
        %p516 = pneg %p220
        %p517 = pneg %p217
        %p518 = scmp.lt.s32.totalorder %s36, 3
        %s519 = scalar_select %p518, %s36, 3
        %s520 = smul.addr %s519, 4
        %s521 = scalar_lea.vmem %s7, %s520
        %p522 = pneg %p246
        %p523 = pneg %p243
        %p524 = pneg %p267
        %p525 = pneg %p264
        %p526 = pneg %p288
        %p527 = pneg %p285
        %p528 = pneg %p309
        %p529 = pneg %p306
        %p530 = pneg %p330
        %p531 = pneg %p327
        %p532 = pneg %p356
        %p533 = pneg %p353
        %s534 = sand.u32 %s343, 1
        %s535 = scalar_lea.sflag [#allocation4], %s534
        %s536 = sand.u32 %s343, 1
        %s537 = scalar_lea.vmem [#allocation3], %s536
        %p538 = pneg %p382
        %p539 = pneg %p379
        %s540 = sand.u32 %s369, 1
        %s541 = scalar_lea.sflag [#allocation6], %s540
        %s542 = sand.u32 %s369, 1
        %s543 = scalar_lea.vmem [#allocation5], %s542
        %p544 = scmp.lt.s32.totalorder %s35, 1
        %s545 = scalar_select %p544, %s35, 1
        %s546 = smul.addr %s545, 4
        %s547 = scalar_lea.vmem %s0, %s546
        %p548 = scmp.lt.s32.totalorder %s36, 3
        %s549 = scalar_select %p548, %s36, 3
        %s550 = smul.addr %s549, 4
        %s551 = smul.addr %s550, 4
        %s552 = scalar_lea.vmem %s1, %s551
        %p553 = scmp.lt.s32.totalorder %s36, 3
        %s554 = scalar_select %p553, %s36, 3
        %s555 = smul.addr %s554, 4
        %s556 = smul.addr %s555, 4
        %s557 = scalar_lea.vmem %s2, %s556
        %p558 = scmp.lt.s32.totalorder %s36, 3
        %s559 = scalar_select %p558, %s36, 3
        %s560 = smul.addr %s559, 4
        %s561 = smul.addr %s560, 4
        %s562 = scalar_lea.vmem %s3, %s561
        %p563 = scmp.lt.s32.totalorder %s36, 3
        %s564 = scalar_select %p563, %s36, 3
        %s565 = scalar_lea.vmem %s4, %s564
        %p566 = scmp.lt.s32.totalorder %s36, 3
        %s567 = scalar_select %p566, %s36, 3
        %s568 = scalar_lea.vmem %s5, %s567
        %p569 = scmp.lt.s32.totalorder %s36, 3
        %s570 = scalar_select %p569, %s36, 3
        %s571 = scalar_lea.vmem %s6, %s570
        %p572 = scmp.lt.s32.totalorder %s36, 3
        %s573 = scalar_select %p572, %s36, 3
        %s574 = smul.addr %s573, 4
        %s575 = scalar_lea.vmem %s7, %s574
        %p577 = scmp.eq.s32.totalorder %s36, 0
        // Predicated region
        $region69: #{tpu_custom_call.1} parent=67 // pred_check
          %p578 = pneg %p577
        $region70: #{tpu_custom_call.1} parent=67 // pred_check_branch
          %580 = sbr.rel (%p578) target = $region72
        $region71: #{tpu_custom_call.1} parent=67 // pred_region
          %vm581 = vcmask 261120
          %582 = vst.msk [vmem:[#allocation2] sm:$0xff] %vm581, 0.0
        $region72: #{tpu_custom_call.1} parent=67 // pred_fallthru
          _
        %v583 = vld [vmem:[%s547] sm:$0xf]
        %v584 = vld [vmem:[%s552] sm:$0xf]
        %v585 = vld [vmem:[%s552 + $0x4] sm:$0xf]
        %v586 = vld [vmem:[%s552 + $0x8] sm:$0xf]
        %v587 = vld [vmem:[%s552 + $0xc] sm:$0xf]
        %v588 = vld [vmem:[%s565] sm:$0x1]
        %v590 = vperm.slane %v588, 0
        %v596 = vunpack.c.l.b16 %v584
        %v597 = vunpack.c.l.b16 %v585
        %v598 = vunpack.c.l.b16 %v586
        %v599 = vunpack.c.l.b16 %v587
        %v600 = vpack.c.b16 %v597, %v596
        %v601 = vpack.c.b16 %v599, %v598
        %vm604 = vcmask 261120
        %v606 = vsel %vm604, %v583, 0
        %608 = vmatpush.bf16.msra.mxu0 0
        %609 = vmatpush.bf16.msra.mxu0 0
        %610 = vmatpush.bf16.msra.mxu0 0
        %611 = vmatpush.bf16.msra.mxu0 0
        %612 = vmatpush.bf16.msra.mxu0 0
        %613 = vmatpush.bf16.msra.mxu0 0
        %614 = vmatpush.bf16.msra.mxu0 %v601
        %615 = vmatpush.bf16.msra.mxu0 %v600
        %616 = vmatmul.bf16.gmra.mxu0 %v606
        %v617 = vpop.f32.mrf.mxu0
        %v618 = vadd.f32 %v590, %v617
        %v619 = vpop.f32.mrf.mxu0
        %620 = vdwg.mxu0
        %v621 = vmul.f32 %v618, 0.35355338
        %v622 = vld [vmem:[%s557] sm:$0xf]
        %v623 = vld [vmem:[%s557 + $0x4] sm:$0xf]
        %v624 = vld [vmem:[%s557 + $0x8] sm:$0xf]
        %v625 = vld [vmem:[%s557 + $0xc] sm:$0xf]
        %v626 = vld [vmem:[%s568] sm:$0x1]
        %v628 = vperm.slane %v626, 0
        %v634 = vunpack.c.l.b16 %v622
        %v635 = vunpack.c.l.b16 %v623
        %v636 = vunpack.c.l.b16 %v624
        %v637 = vunpack.c.l.b16 %v625
        %v638 = vpack.c.b16 %v635, %v634
        %v639 = vpack.c.b16 %v637, %v636
        %642 = vmatpush.bf16.msra.mxu0 0
        %643 = vmatpush.bf16.msra.mxu0 0
        %644 = vmatpush.bf16.msra.mxu0 0
        %645 = vmatpush.bf16.msra.mxu0 0
        %646 = vmatpush.bf16.msra.mxu0 0
        %647 = vmatpush.bf16.msra.mxu0 0
        %648 = vmatpush.bf16.msra.mxu0 %v639
        %649 = vmatpush.bf16.msra.mxu0 %v638
        %650 = vmatmul.bf16.gmra.mxu0 %v606
        %v651 = vpop.f32.mrf.mxu0
        %v652 = vadd.f32 %v628, %v651
        %v653 = vpop.f32.mrf.mxu0
        %654 = vdwg.mxu0
        %v655 = vld [vmem:[%s562] sm:$0xf]
        %v656 = vld [vmem:[%s562 + $0x4] sm:$0xf]
        %v657 = vld [vmem:[%s562 + $0x8] sm:$0xf]
        %v658 = vld [vmem:[%s562 + $0xc] sm:$0xf]
        %v659 = vld [vmem:[%s571] sm:$0x1]
        %v661 = vperm.slane %v659, 0
        %v667 = vunpack.c.l.b16 %v655
        %v668 = vunpack.c.l.b16 %v656
        %v669 = vunpack.c.l.b16 %v657
        %v670 = vunpack.c.l.b16 %v658
        %v671 = vpack.c.b16 %v668, %v667
        %v672 = vpack.c.b16 %v670, %v669
        %675 = vmatpush.bf16.msra.mxu0 0
        %676 = vmatpush.bf16.msra.mxu0 0
        %677 = vmatpush.bf16.msra.mxu0 0
        %678 = vmatpush.bf16.msra.mxu0 0
        %679 = vmatpush.bf16.msra.mxu0 0
        %680 = vmatpush.bf16.msra.mxu0 0
        %681 = vmatpush.bf16.msra.mxu0 %v672
        %682 = vmatpush.bf16.msra.mxu0 %v671
        %683 = vmatmul.bf16.gmra.mxu0 %v606
        %v684 = vpop.f32.mrf.mxu0
        %v685 = vadd.f32 %v661, %v684
        %v686 = vpop.f32.mrf.mxu0
        %687 = vdwg.mxu0
        %v688 = vpack.c.bf16 %v621, %v621
        %v689 = vpack.c.bf16 %v652, %v652
        %v690 = vpack.c.bf16 %v685, %v685
        %vm691 = vcmask 64512
        %v693 = vsel %vm691, %v688, 0
        %v696 = vsel %vm691, %v689, 0
        %698 = vmatpush.bf16.xpose.msra.mxu0 0
        %699 = vmatpush.bf16.xpose.msra.mxu0 0
        %700 = vmatpush.bf16.xpose.msra.mxu0 0
        %701 = vmatpush.bf16.xpose.msra.mxu0 0
        %702 = vmatpush.bf16.xpose.msra.mxu0 0
        %703 = vmatpush.bf16.xpose.msra.mxu0 0
        %704 = vmatpush.bf16.xpose.msra.mxu0 0
        %705 = vmatpush.bf16.xpose.msra.mxu0 %v696
        %706 = vmatmul.bf16.gmra.mxu0 %v693
        %v707 = vpop.f32.mrf.mxu0
        %v708 = vadd.f32 0.0, %v707
        %v709 = vpop.f32.mrf.mxu0
        %710 = vdwg.mxu0
        %v711 = vsel %vm691, %v708, -inf
        %712 = vmax.xlane.f32.xlu0 %v711
        %v713 = vpop.xlane.xlu0 %712
        %v714 = vsub.f32 %v708, %v713
        %v715 = vmul.f32 %v714, 1.442695
        %v716 = vpow.pop %v715
        %v717 = vsel %vm691, %v716, 0.0
        %718 = vadd.xlane.f32.xlu0 %v717
        %v719 = vpop.xlane.xlu0 %718
        %v720 = vrcp.pop %v719
        %v721 = vmul.f32 %v716, %v720
        %v722 = vpack.c.bf16 %v721, %v721
        %v724 = vsel %vm691, %v722, 0
        %vm726 = vcmask 1043456
        %v728 = vsel %vm726, %v690, 0
        %730 = vmatpush.bf16.msra.mxu0 0
        %731 = vmatpush.bf16.msra.mxu0 0
        %732 = vmatpush.bf16.msra.mxu0 0
        %733 = vmatpush.bf16.msra.mxu0 0
        %734 = vmatpush.bf16.msra.mxu0 0
        %735 = vmatpush.bf16.msra.mxu0 0
        %736 = vmatpush.bf16.msra.mxu0 0
        %737 = vmatpush.bf16.msra.mxu0 %v728
        %738 = vmatmul.bf16.gmra.mxu0 %v724
        %v739 = vpop.f32.mrf.mxu0
        %v740 = vadd.f32 0.0, %v739
        %v741 = vpop.f32.mrf.mxu0
        %742 = vdwg.mxu0
        %v743 = vld [vmem:[#allocation2] sm:$0xff]
        %v744 = vpack.c.bf16 %v740, %v740
        %v745 = vld [vmem:[%s575] sm:$0xf]
        %v747 = vsel %vm691, %v744, 0
        %v750 = vsel %vm726, %v745, 0
        %752 = vmatpush.bf16.msra.mxu0 0
        %753 = vmatpush.bf16.msra.mxu0 0
        %754 = vmatpush.bf16.msra.mxu0 0
        %755 = vmatpush.bf16.msra.mxu0 0
        %756 = vmatpush.bf16.msra.mxu0 0
        %757 = vmatpush.bf16.msra.mxu0 0
        %758 = vmatpush.bf16.msra.mxu0 0
        %759 = vmatpush.bf16.msra.mxu0 %v750
        %760 = vmatmul.bf16.gmra.mxu0 %v747
        %v761 = vpop.f32.mrf.mxu0
        %v762 = vadd.f32 0.0, %v761
        %v763 = vpop.f32.mrf.mxu0
        %764 = vdwg.mxu0
        %v765 = vadd.f32 %v743, %v762
        %766 = vst.msk [vmem:[#allocation2] sm:$0xff] %vm604, %v765
        %p767 = scmp.eq.s32.totalorder %s36, 3
        // Predicated region
        $region73: #{tpu_custom_call.1} parent=67 // pred_check
          %p768 = pneg %p767
        $region74: #{tpu_custom_call.1} parent=67 // pred_check_branch
          %770 = sbr.rel (%p768) target = $region76
        $region75: #{tpu_custom_call.1} parent=67 // pred_region
          %v771 = vld [vmem:[#allocation2] sm:$0xff]
          %v772 = vld [vmem:[%s8] sm:$0x1]
          %v774 = vperm.slane %v772, 0
          %v776 = vadd.f32 %v771, %v774
          %v777 = vsel %vm604, %v776, 0.0
          %778 = vadd.xlane.f32.xlu0 %v777
          %v779 = vpop.xlane.xlu0 %778
          %v780 = vrcp.pop 32.0
          %v781 = vmul.f32 32.0, %v780
          %v782 = vsub.f32 1.0, %v781
          %v783 = vmul.f32 %v780, %v782
          %v784 = vadd.f32 %v780, %v783
          %vm785 = vweird.f32 %v780
          %v786 = vsel %vm785, %v780, %v784
          %v787 = vmul.f32 %v779, %v786
          %v788 = vsub.f32 %v776, %v787
          %v789 = vmul.f32 %v788, %v788
          %v790 = vsel %vm604, %v789, 0.0
          %791 = vadd.xlane.f32.xlu0 %v790
          %v792 = vpop.xlane.xlu0 %791
          %v793 = vmul.f32 %v792, %v786
          %v794 = vadd.f32 %v793, 1e-05
          %v795 = vrsqrt.pop %v794
          %v796 = vmul.f32 %v795, %v794
          %v797 = vmul.f32 %v796, %v795
          %v798 = vmul.f32 0.5, %v797
          %v799 = vsub.f32 1.5, %v798
          %v800 = vmul.f32 %v795, %v799
          %vm801 = vweird.f32 %v794
          %vm802 = vweird.f32 %v795
          %vm803 = vmor %vm801, %vm802
          %v804 = vsel %vm803, %v795, %v800
          %v805 = vmul.f32 %v788, %v804
          %v806 = vld [vmem:[%s9] sm:$0x1]
          %v808 = vperm.slane %v806, 0
          %v810 = vmul.f32 %v805, %v808
          %v811 = vld [vmem:[%s10] sm:$0x1]
          %v813 = vperm.slane %v811, 0
          %v815 = vadd.f32 %v810, %v813
          %v816 = vld [vmem:[%s11] sm:$0x1]
          %v818 = vperm.slane %v816, 0
          %v820 = vmul.f32 %v815, %v818
          %v821 = vsel %vm604, %v820, 0.0
          %822 = vadd.xlane.f32.xlu0 %v821
          %v823 = vpop.xlane.xlu0 %822
          %v824 = vrot.slane %v823, 4
          %v825 = vmax.f32 %v823, %v824
          %v826 = vrot.slane %v825, 2
          %v827 = vmax.f32 %v825, %v826
          %v828 = vrot.slane %v827, 1
          %v829 = vmax.f32 %v827, %v828
          %v830 = vsub.f32 %v823, %v829
          %v831 = vmul.f32 %v830, 1.442695
          %v832 = vpow.pop %v831
          %v833 = vrot.slane %v832, 4
          %v834 = vadd.f32 %v832, %v833
          %v835 = vrot.slane %v834, 2
          %v836 = vadd.f32 %v834, %v835
          %v837 = vrot.slane %v836, 1
          %v838 = vadd.f32 %v836, %v837
          %v839 = vrcp.pop %v838
          %v840 = vmul.f32 %v838, %v839
          %v841 = vsub.f32 1.0, %v840
          %v842 = vmul.f32 %v839, %v841
          %v843 = vadd.f32 %v839, %v842
          %vm844 = vweird.f32 %v838
          %vm845 = vweird.f32 %v839
          %vm846 = vmor %vm844, %vm845
          %v847 = vsel %vm846, %v839, %v843
          %v848 = vand.u32 2147483647, %v838
          %vm849 = vcmp.eq.f32.partialorder %v848, 8.507059e+37
          %v850 = vand.u32 %v838, 2147483648
          %v851 = vor.u32 1.1754944e-38, %v850
          %v852 = vsel %vm849, %v851, %v847
          %v853 = vmul.f32 %v832, %v852
          %v854 = vmul.f32 %v776, %v853
          %v855 = vsel %vm604, %v854, 0.0
          %v856 = vrot.slane %v855, 4
          %v857 = vadd.f32 %v855, %v856
          %v858 = vrot.slane %v857, 2
          %v859 = vadd.f32 %v857, %v858
          %v860 = vrot.slane %v859, 1
          %v861 = vadd.f32 %v859, %v860
          %vm862 = vcmask 253952
          %863 = vst.msk [vmem:[%s537] sm:$0x1] %vm862, %v861
          %v865 = vlaneseq
          %v866 = vand.u32 %v865, 127
          %v867 = vperm.slane %v853, %v866
          %vm869 = vcmask 57344
          %870 = vst.msk [vmem:[%s543] sm:$0x1] %vm869, %v867
        $region76: #{tpu_custom_call.1} parent=67 // pred_fallthru
          _
        %s871 = sand.u32 %s343, 1
        %s872 = scalar_lea.sflag [#allocation4], %s871
        %s873 = sand.u32 %s343, 1
        %s874 = scalar_lea.vmem [#allocation3], %s873
        %s875 = sand.u32 %s369, 1
        %s876 = scalar_lea.sflag [#allocation6], %s875
        %s877 = sand.u32 %s369, 1
        %s878 = scalar_lea.vmem [#allocation5], %s877
        // Predicated region
        $region77: #{tpu_custom_call.1} parent=67 // pred_check
          %p879 = pneg %p353
        $region78: #{tpu_custom_call.1} parent=67 // pred_check_branch
          %881 = sbr.rel (%p879) target = $region80
        $region79: #{tpu_custom_call.1} parent=67 // pred_region
          %883 = vsyncadd %s872, 0
          %s884 = scalar_lea.hbm %s12, %s35
          %s886 = sshll.u32 %s874, 4
          %s887 = int_to_ptr.vmem [resolvable:$true] %s886
          %s888 = sshll.u32 %s884, 4
          %s889 = int_to_ptr.hbm [resolvable:$true] %s888
          %891 = dma.vmem_to_hbm [thread:$0]  %s887, 16, %s889, %s872
        $region80: #{tpu_custom_call.1} parent=67 // pred_fallthru
          _
        // Predicated region
        $region81: #{tpu_custom_call.1} parent=67 // pred_check
          %p892 = pneg %p379
        $region82: #{tpu_custom_call.1} parent=67 // pred_check_branch
          %894 = sbr.rel (%p892) target = $region84
        $region83: #{tpu_custom_call.1} parent=67 // pred_region
          %896 = vsyncadd %s876, 0
          %s897 = scalar_lea.hbm %s13, %s35
          %s899 = sshll.u32 %s878, 4
          %s900 = int_to_ptr.vmem [resolvable:$true] %s899
          %s901 = sshll.u32 %s897, 4
          %s902 = int_to_ptr.hbm [resolvable:$true] %s901
          %904 = dma.vmem_to_hbm [thread:$0]  %s900, 16, %s902, %s876
        $region84: #{tpu_custom_call.1} parent=67 // pred_fallthru
          _
      $region68: #{tpu_custom_call.1} parent=5 // pred_fallthru
        _
      %p905 = scmp.le.s32.totalorder 2, %s26
      // Predicated region
      $region85: #{tpu_custom_call.1} parent=5 // pred_check
        %p906 = pneg %p905
      $region86: #{tpu_custom_call.1} parent=5 // pred_check_branch
        %908 = sbr.rel (%p906) target = $region88
      $region87: #{tpu_custom_call.1} parent=5 // pred_region
        %s909 = ssub.s32 %s26, 2
        // Predicated region
        $region89: #{tpu_custom_call.1} parent=87 // pred_check
          %p910 = pneg %p359
        $region90: #{tpu_custom_call.1} parent=87 // pred_check_branch
          %912 = sbr.rel (%p910) target = $region92
        $region91: #{tpu_custom_call.1} parent=87 // pred_region
          %s913 = sand.u32 %s344, 1
          %s914 = scalar_lea.sflag [#allocation4], %s913
          %s915 = sand.u32 %s344, 1
          %s916 = scalar_lea.vmem [#allocation3], %s915
          %918 = dma.done %s914, 16
        $region92: #{tpu_custom_call.1} parent=87 // pred_fallthru
          _
        // Predicated region
        $region93: #{tpu_custom_call.1} parent=87 // pred_check
          %p919 = pneg %p385
        $region94: #{tpu_custom_call.1} parent=87 // pred_check_branch
          %921 = sbr.rel (%p919) target = $region96
        $region95: #{tpu_custom_call.1} parent=87 // pred_region
          %s922 = sand.u32 %s370, 1
          %s923 = scalar_lea.sflag [#allocation6], %s922
          %s924 = sand.u32 %s370, 1
          %s925 = scalar_lea.vmem [#allocation5], %s924
          %927 = dma.done %s923, 16
        $region96: #{tpu_custom_call.1} parent=87 // pred_fallthru
          _
      $region88: #{tpu_custom_call.1} parent=5 // pred_fallthru
        _
    $region6: #{tpu_custom_call.1} parent=1 // loop_footer
      %s30 = sadd.s32 1, %s26
    $region7: #{tpu_custom_call.1} parent=1 // loop_footer_branch
      %25 = sbr.rel target = $region3
    $region8: #{tpu_custom_call.1} parent=1 // loop_exit
      _
    %928 = vsyncpa [#allocation4], 1
    %s929 = scalar_lea.sflag [#allocation4], 1
    %930 = vsyncpa %s929, 1
    %931 = vsyncpa [#allocation6], 1
    %s932 = scalar_lea.sflag [#allocation6], 1
    %933 = vsyncpa %s932, 1

</llo_original>
